<compile_context>
chip_gen: v5e
topology: v5e:2x2
jax: 0.10.0
libtpu: 0.0.40
codegen_flags: <defaults>
</compile_context>

<pallas_src>
import jax
import jax.numpy as jnp
from jax.experimental import pallas as pl
from jax.experimental.pallas import tpu as pltpu


# ------------------------------- fused kernel ------------------------------- #

def fused_spatial_fusion_kernel(x_ref, wc_ref, bc_ref, w1_ref, b1_ref,
                                w2_ref, b2_ref, out_ref):
    """Conv2d((H,1),valid) + MaxPool1d(2,2) + Linear/ReLU + Linear/ReLU, fused.

    x_ref : (TN, W*CH)    bf16  per-batch-row features, column = w*CH + (ci*H+h)
    wc_ref: (CH, 64)      bf16  reshaped conv weight
    bc_ref: (1, 64)       f32   conv bias
    w1_ref: (Wh, 64, Hp)  bf16  Linear-1 weight, permuted to (width-pair, chan, out)
    b1_ref: (1, Hp)       f32
    w2_ref: (Hp, Hp)      bf16
    b2_ref: (1, Hp)       f32
    out_ref:(TN, Hp)      f32   (Hp = mlp_hidden_dim padded to multiple of 128)
    """
    ch = wc_ref.shape[0]
    w_half = w1_ref.shape[0]
    tn = out_ref.shape[0]
    hp = out_ref.shape[1]

    wc = wc_ref[...]          # hoisted: loaded once per tile
    bc = bc_ref[...]

    acc = jnp.zeros((tn, hp), jnp.float32)
    # Wh (= num_embeddings/2) is small and static -> unrolled Python loop.
    # Each iteration: conv matmul for one width pair, max-pool the pair, and
    # immediately contract the 64 pooled channels into the Linear-1 output.
    # TODO(synk): for very large num_embeddings switch to lax.fori_loop with
    # dynamic (pl.multiple_of-hinted) lane slices to avoid code bloat.
    for k in range(w_half):
        off = 2 * k * ch
        xe = x_ref[:, pl.ds(off, ch)]          # width 2k   : (TN, CH) bf16
        xo = x_ref[:, pl.ds(off + ch, ch)]     # width 2k+1 : (TN, CH) bf16
        ye = jnp.dot(xe, wc, preferred_element_type=jnp.float32)
        yo = jnp.dot(xo, wc, preferred_element_type=jnp.float32)
        # max(conv_e + b, conv_o + b) == max(conv_e, conv_o) + b
        p = jnp.maximum(ye, yo) + bc           # (TN, 64) f32, pooled conv out
        acc = acc + jnp.dot(p.astype(jnp.bfloat16), w1_ref[k],
                            preferred_element_type=jnp.float32)

    h1 = jnp.maximum(acc + b1_ref[...], 0.0)                       # ReLU
    h2 = jnp.dot(h1.astype(jnp.bfloat16), w2_ref[...],
                 preferred_element_type=jnp.float32) + b2_ref[...]
    out_ref[...] = jnp.maximum(h2, 0.0)                            # ReLU


# -------------------------------- forward pass ------------------------------ #

def spatial_fusion_forward(x, params, mlp_hidden_dim, batch_tile=None):
    conv_w, conv_b, w1, b1, w2, b2 = params
    N, C, H, W = x.shape
    assert C == 64, "conv in/out channels are fixed at 64"
    assert W % 2 == 0, "MaxPool1d(2,2): flattened length must be even"
    CH = C * H
    Wh = W // 2
    d_in = 64 * Wh
    assert w1.shape == (mlp_hidden_dim, d_in)

    # ---- glue: layout plumbing (ONE transpose, all reshapes are free) ----
    # column order per batch row: w*CH + ci*H + h  (w-major, then (ci,h))
    xflat = jnp.transpose(x, (0, 3, 1, 2)).reshape(N, W * CH)
    wc = conv_w.reshape(64, CH).T                                  # (CH, 64)
    bc = conv_b.reshape(1, 64).astype(jnp.float32)

    # PyTorch pooled-flatten column order is co*Wh + k; the kernel consumes one
    # width-pair k (64 channels) at a time -> reshape Linear-1 to (Wh, 64, Hp).
    Hpad = ((mlp_hidden_dim + 127) // 128) * 128                   # lane-dense
    w1p = jnp.transpose(w1.reshape(mlp_hidden_dim, 64, Wh), (2, 1, 0))
    w1p = jnp.pad(w1p, ((0, 0), (0, 0), (0, Hpad - mlp_hidden_dim)))
    b1p = jnp.pad(b1, (0, Hpad - mlp_hidden_dim)).reshape(1, Hpad).astype(jnp.float32)
    w2p = jnp.pad(w2.T, ((0, Hpad - mlp_hidden_dim), (0, Hpad - mlp_hidden_dim)))
    b2p = jnp.pad(b2, (0, Hpad - mlp_hidden_dim)).reshape(1, Hpad).astype(jnp.float32)

    # bf16 MXU operands (accumulation stays f32 inside the kernel).
    xflat = xflat.astype(jnp.bfloat16)
    wc = wc.astype(jnp.bfloat16)
    w1p = w1p.astype(jnp.bfloat16)
    w2p = w2p.astype(jnp.bfloat16)

    # ---- batch tiling: bounded per-tile VMEM, pipelined, megacore-parallel ----
    if batch_tile is None:
        batch_tile = N if N <= 128 else 128
    TN = batch_tile
    if TN < N:
        assert TN % 16 == 0, "partial batch tiles must be sublane-aligned (x is bf16)"
    Npad = ((N + TN - 1) // TN) * TN
    if Npad != N:
        xflat = jnp.pad(xflat, ((0, Npad - N), (0, 0)))
    grid = (Npad // TN,)

    flops = 2 * Npad * (W * CH * 64 + d_in * Hpad + Hpad * Hpad)
    bytes_accessed = (xflat.size * 2 + wc.size * 2 + w1p.size * 2 + w2p.size * 2
                      + (bc.size + b1p.size + b2p.size) * 4 + Npad * Hpad * 4)

    out = pl.pallas_call(
        fused_spatial_fusion_kernel,
        out_shape=jax.ShapeDtypeStruct((Npad, Hpad), jnp.float32),
        grid=grid,
        in_specs=[
            pl.BlockSpec((TN, W * CH), lambda i: (i, 0)),      # per-tile input
            pl.BlockSpec((CH, 64), lambda i: (0, 0)),          # conv weight
            pl.BlockSpec((1, 64), lambda i: (0, 0)),           # conv bias
            pl.BlockSpec((Wh, 64, Hpad), lambda i: (0, 0, 0)),  # Linear-1 (perm)
            pl.BlockSpec((1, Hpad), lambda i: (0, 0)),         # b1
            pl.BlockSpec((Hpad, Hpad), lambda i: (0, 0)),      # Linear-2
            pl.BlockSpec((1, Hpad), lambda i: (0, 0)),         # b2
        ],
        out_specs=pl.BlockSpec((TN, Hpad), lambda i: (i, 0)),
        compiler_params=pltpu.CompilerParams(
            dimension_semantics=("parallel",),
            vmem_limit_bytes=32 * 1024 * 1024),
        cost_estimate=pl.CostEstimate(
            flops=flops, transcendentals=0, bytes_accessed=bytes_accessed),
    )(xflat, wc, bc, w1p, b1p, w2p, b2p)

    return out[:N, :mlp_hidden_dim]


# ----------------------------- pure-JAX reference ---------------------------- #

def reference_forward(x, params):
    conv_w, conv_b, w1, b1, w2, b2 = params
    N = x.shape[0]
    conv = jnp.einsum('oih,nihw->now', conv_w[..., 0], x) + conv_b[None, :, None]
    flat = conv.reshape(N, -1)                       # (N, 64*W), channel-major
    pooled = flat.reshape(N, -1, 2).max(axis=-1)     # MaxPool1d(2,2)
    h1 = jnp.maximum(pooled @ w1.T + b1, 0.0)
    return jnp.maximum(h1 @ w2.T + b2, 0.0)


# ----------------------------------- params ---------------------------------- #

def init_params(key, eeg_channels, embedding_dim, num_embeddings, mlp_hidden_dim):
    d_in = (num_embeddings * embedding_dim) // 2
    ks = jax.random.split(key, 6)
    s = 0.05
    conv_w = jax.random.normal(ks[0], (64, 64, eeg_channels, 1), jnp.float32) * s
    conv_b = jax.random.normal(ks[1], (64,), jnp.float32) * s
    w1 = jax.random.normal(ks[2], (mlp_hidden_dim, d_in), jnp.float32) * s
    b1 = jax.random.normal(ks[3], (mlp_hidden_dim,), jnp.float32) * s
    w2 = jax.random.normal(ks[4], (mlp_hidden_dim, mlp_hidden_dim), jnp.float32) * s
    b2 = jax.random.normal(ks[5], (mlp_hidden_dim,), jnp.float32) * s
    return conv_w, conv_b, w1, b1, w2, b2


# ------------------------------------ main ------------------------------------ #

if __name__ == "__main__":
    # embedding_dim must be 64 (conv in/out channels); num_embeddings = conv width.
    eeg_channels = 4
    embedding_dim = 64
    num_embeddings = 8
    mlp_hidden_dim = 32
    batch = 32            # with batch_tile=16 this exercises a 2-step parallel grid

    key = jax.random.PRNGKey(0)
    kx, kp = jax.random.split(key)
    x = jax.random.normal(
        kx, (batch, embedding_dim, eeg_channels, num_embeddings), jnp.float32)
    params = init_params(kp, eeg_channels, embedding_dim, num_embeddings,
                         mlp_hidden_dim)

    fwd = jax.jit(lambda xx, pp: spatial_fusion_forward(
        xx, pp, mlp_hidden_dim, batch_tile=16))
    out = jax.block_until_ready(fwd(x, params))

    ref = reference_forward(x, params)
    assert out.shape == (batch, mlp_hidden_dim)
    # bf16 MXU operands (f32 accumulation) -> loosened tolerance.
    assert jnp.allclose(out, ref, rtol=2e-2, atol=2e-2), "mismatch vs reference"

    print("KERNEL_OK")
</pallas_src>

<mosaic_0001>
module attributes {stable_mosaic.version = 11 : i64} {
  func.func @fused_spatial_fusion_kernel(%arg0: i32, %arg1: memref<16x2048xbf16, #tpu.memory_space<vmem>>, %arg2: memref<256x64xbf16, #tpu.memory_space<vmem>>, %arg3: memref<1x64xf32, #tpu.memory_space<vmem>>, %arg4: memref<4x64x128xbf16, #tpu.memory_space<vmem>>, %arg5: memref<1x128xf32, #tpu.memory_space<vmem>>, %arg6: memref<128x128xbf16, #tpu.memory_space<vmem>>, %arg7: memref<1x128xf32, #tpu.memory_space<vmem>>, %arg8: memref<16x128xf32, #tpu.memory_space<vmem>>) attributes {dimension_semantics = [#tpu.dimension_semantics<parallel>], iteration_bounds = array<i64: 2>, scalar_prefetch = 0 : i64, scratch_operands = 0 : i64, tpu.core_type = #tpu.core_type<tc>, window_params = [{transform_indices = @transform_0, window_bounds = array<i64: 16, 2048>}, {pipeline_mode = #tpu.pipeline_mode<synchronous>, transform_indices = @transform_1, window_bounds = array<i64: 256, 64>}, {pipeline_mode = #tpu.pipeline_mode<synchronous>, transform_indices = @transform_2, window_bounds = array<i64: 1, 64>}, {pipeline_mode = #tpu.pipeline_mode<synchronous>, transform_indices = @transform_3, window_bounds = array<i64: 4, 64, 128>}, {pipeline_mode = #tpu.pipeline_mode<synchronous>, transform_indices = @transform_4, window_bounds = array<i64: 1, 128>}, {pipeline_mode = #tpu.pipeline_mode<synchronous>, transform_indices = @transform_5, window_bounds = array<i64: 128, 128>}, {pipeline_mode = #tpu.pipeline_mode<synchronous>, transform_indices = @transform_6, window_bounds = array<i64: 1, 128>}, {transform_indices = @transform_7, window_bounds = array<i64: 16, 128>}]} {
    %c0 = arith.constant 0 : index
    %c0_0 = arith.constant 0 : index
    %0 = vector.load %arg2[%c0, %c0_0] : memref<256x64xbf16, #tpu.memory_space<vmem>>, vector<256x64xbf16>
    %c0_1 = arith.constant 0 : index
    %c0_2 = arith.constant 0 : index
    %1 = vector.load %arg3[%c0_1, %c0_2] : memref<1x64xf32, #tpu.memory_space<vmem>>, vector<1x64xf32>
    %cst = arith.constant 0.000000e+00 : f32
    %2 = vector.broadcast %cst : f32 to vector<16x128xf32>
    %c0_3 = arith.constant 0 : index
    %c0_4 = arith.constant 0 : index
    %3 = vector.load %arg1[%c0_3, %c0_4] : memref<16x2048xbf16, #tpu.memory_space<vmem>>, vector<16x256xbf16>
    %c0_5 = arith.constant 0 : index
    %c256 = arith.constant 256 : index
    %4 = vector.load %arg1[%c0_5, %c256] : memref<16x2048xbf16, #tpu.memory_space<vmem>>, vector<16x256xbf16>
    %cst_6 = arith.constant dense<0.000000e+00> : vector<16x64xf32>
    %5 = tpu.matmul %3, %0, %cst_6 {dimension_numbers = #tpu.dot_dimension_numbers<[1], [0], [0], [1], [0, 0, 1, 1], [], []>} : vector<16x256xbf16>, vector<256x64xbf16>, vector<16x64xf32> -> vector<16x64xf32>
    %cst_7 = arith.constant dense<0.000000e+00> : vector<16x64xf32>
    %6 = tpu.matmul %4, %0, %cst_7 {dimension_numbers = #tpu.dot_dimension_numbers<[1], [0], [0], [1], [0, 0, 1, 1], [], []>} : vector<16x256xbf16>, vector<256x64xbf16>, vector<16x64xf32> -> vector<16x64xf32>
    %7 = arith.maximumf %5, %6 : vector<16x64xf32>
    %8 = vector.broadcast %1 : vector<1x64xf32> to vector<16x64xf32>
    %9 = arith.addf %7, %8 : vector<16x64xf32>
    %10 = arith.truncf %9 : vector<16x64xf32> to vector<16x64xbf16>
    %c0_8 = arith.constant 0 : index
    %c0_9 = arith.constant 0 : index
    %c0_10 = arith.constant 0 : index
    %11 = vector.load %arg4[%c0_8, %c0_9, %c0_10] : memref<4x64x128xbf16, #tpu.memory_space<vmem>>, vector<1x64x128xbf16>
    %12 = vector.shape_cast %11 : vector<1x64x128xbf16> to vector<64x128xbf16>
    %cst_11 = arith.constant dense<0.000000e+00> : vector<16x128xf32>
    %13 = tpu.matmul %10, %12, %cst_11 {dimension_numbers = #tpu.dot_dimension_numbers<[1], [0], [0], [1], [0, 0, 1, 1], [], []>} : vector<16x64xbf16>, vector<64x128xbf16>, vector<16x128xf32> -> vector<16x128xf32>
    %14 = arith.addf %2, %13 : vector<16x128xf32>
    %c0_12 = arith.constant 0 : index
    %c512 = arith.constant 512 : index
    %15 = vector.load %arg1[%c0_12, %c512] : memref<16x2048xbf16, #tpu.memory_space<vmem>>, vector<16x256xbf16>
    %c0_13 = arith.constant 0 : index
    %c768 = arith.constant 768 : index
    %16 = vector.load %arg1[%c0_13, %c768] : memref<16x2048xbf16, #tpu.memory_space<vmem>>, vector<16x256xbf16>
    %cst_14 = arith.constant dense<0.000000e+00> : vector<16x64xf32>
    %17 = tpu.matmul %15, %0, %cst_14 {dimension_numbers = #tpu.dot_dimension_numbers<[1], [0], [0], [1], [0, 0, 1, 1], [], []>} : vector<16x256xbf16>, vector<256x64xbf16>, vector<16x64xf32> -> vector<16x64xf32>
    %cst_15 = arith.constant dense<0.000000e+00> : vector<16x64xf32>
    %18 = tpu.matmul %16, %0, %cst_15 {dimension_numbers = #tpu.dot_dimension_numbers<[1], [0], [0], [1], [0, 0, 1, 1], [], []>} : vector<16x256xbf16>, vector<256x64xbf16>, vector<16x64xf32> -> vector<16x64xf32>
    %19 = arith.maximumf %17, %18 : vector<16x64xf32>
    %20 = vector.broadcast %1 : vector<1x64xf32> to vector<16x64xf32>
    %21 = arith.addf %19, %20 : vector<16x64xf32>
    %22 = arith.truncf %21 : vector<16x64xf32> to vector<16x64xbf16>
    %c1 = arith.constant 1 : index
    %c0_16 = arith.constant 0 : index
    %c0_17 = arith.constant 0 : index
    %23 = vector.load %arg4[%c1, %c0_16, %c0_17] : memref<4x64x128xbf16, #tpu.memory_space<vmem>>, vector<1x64x128xbf16>
    %24 = vector.shape_cast %23 : vector<1x64x128xbf16> to vector<64x128xbf16>
    %cst_18 = arith.constant dense<0.000000e+00> : vector<16x128xf32>
    %25 = tpu.matmul %22, %24, %cst_18 {dimension_numbers = #tpu.dot_dimension_numbers<[1], [0], [0], [1], [0, 0, 1, 1], [], []>} : vector<16x64xbf16>, vector<64x128xbf16>, vector<16x128xf32> -> vector<16x128xf32>
    %26 = arith.addf %14, %25 : vector<16x128xf32>
    %c0_19 = arith.constant 0 : index
    %c1024 = arith.constant 1024 : index
    %27 = vector.load %arg1[%c0_19, %c1024] : memref<16x2048xbf16, #tpu.memory_space<vmem>>, vector<16x256xbf16>
    %c0_20 = arith.constant 0 : index
    %c1280 = arith.constant 1280 : index
    %28 = vector.load %arg1[%c0_20, %c1280] : memref<16x2048xbf16, #tpu.memory_space<vmem>>, vector<16x256xbf16>
    %cst_21 = arith.constant dense<0.000000e+00> : vector<16x64xf32>
    %29 = tpu.matmul %27, %0, %cst_21 {dimension_numbers = #tpu.dot_dimension_numbers<[1], [0], [0], [1], [0, 0, 1, 1], [], []>} : vector<16x256xbf16>, vector<256x64xbf16>, vector<16x64xf32> -> vector<16x64xf32>
    %cst_22 = arith.constant dense<0.000000e+00> : vector<16x64xf32>
    %30 = tpu.matmul %28, %0, %cst_22 {dimension_numbers = #tpu.dot_dimension_numbers<[1], [0], [0], [1], [0, 0, 1, 1], [], []>} : vector<16x256xbf16>, vector<256x64xbf16>, vector<16x64xf32> -> vector<16x64xf32>
    %31 = arith.maximumf %29, %30 : vector<16x64xf32>
    %32 = vector.broadcast %1 : vector<1x64xf32> to vector<16x64xf32>
    %33 = arith.addf %31, %32 : vector<16x64xf32>
    %34 = arith.truncf %33 : vector<16x64xf32> to vector<16x64xbf16>
    %c2 = arith.constant 2 : index
    %c0_23 = arith.constant 0 : index
    %c0_24 = arith.constant 0 : index
    %35 = vector.load %arg4[%c2, %c0_23, %c0_24] : memref<4x64x128xbf16, #tpu.memory_space<vmem>>, vector<1x64x128xbf16>
    %36 = vector.shape_cast %35 : vector<1x64x128xbf16> to vector<64x128xbf16>
    %cst_25 = arith.constant dense<0.000000e+00> : vector<16x128xf32>
    %37 = tpu.matmul %34, %36, %cst_25 {dimension_numbers = #tpu.dot_dimension_numbers<[1], [0], [0], [1], [0, 0, 1, 1], [], []>} : vector<16x64xbf16>, vector<64x128xbf16>, vector<16x128xf32> -> vector<16x128xf32>
    %38 = arith.addf %26, %37 : vector<16x128xf32>
    %c0_26 = arith.constant 0 : index
    %c1536 = arith.constant 1536 : index
    %39 = vector.load %arg1[%c0_26, %c1536] : memref<16x2048xbf16, #tpu.memory_space<vmem>>, vector<16x256xbf16>
    %c0_27 = arith.constant 0 : index
    %c1792 = arith.constant 1792 : index
    %40 = vector.load %arg1[%c0_27, %c1792] : memref<16x2048xbf16, #tpu.memory_space<vmem>>, vector<16x256xbf16>
    %cst_28 = arith.constant dense<0.000000e+00> : vector<16x64xf32>
    %41 = tpu.matmul %39, %0, %cst_28 {dimension_numbers = #tpu.dot_dimension_numbers<[1], [0], [0], [1], [0, 0, 1, 1], [], []>} : vector<16x256xbf16>, vector<256x64xbf16>, vector<16x64xf32> -> vector<16x64xf32>
    %cst_29 = arith.constant dense<0.000000e+00> : vector<16x64xf32>
    %42 = tpu.matmul %40, %0, %cst_29 {dimension_numbers = #tpu.dot_dimension_numbers<[1], [0], [0], [1], [0, 0, 1, 1], [], []>} : vector<16x256xbf16>, vector<256x64xbf16>, vector<16x64xf32> -> vector<16x64xf32>
    %43 = arith.maximumf %41, %42 : vector<16x64xf32>
    %44 = vector.broadcast %1 : vector<1x64xf32> to vector<16x64xf32>
    %45 = arith.addf %43, %44 : vector<16x64xf32>
    %46 = arith.truncf %45 : vector<16x64xf32> to vector<16x64xbf16>
    %c3 = arith.constant 3 : index
    %c0_30 = arith.constant 0 : index
    %c0_31 = arith.constant 0 : index
    %47 = vector.load %arg4[%c3, %c0_30, %c0_31] : memref<4x64x128xbf16, #tpu.memory_space<vmem>>, vector<1x64x128xbf16>
    %48 = vector.shape_cast %47 : vector<1x64x128xbf16> to vector<64x128xbf16>
    %cst_32 = arith.constant dense<0.000000e+00> : vector<16x128xf32>
    %49 = tpu.matmul %46, %48, %cst_32 {dimension_numbers = #tpu.dot_dimension_numbers<[1], [0], [0], [1], [0, 0, 1, 1], [], []>} : vector<16x64xbf16>, vector<64x128xbf16>, vector<16x128xf32> -> vector<16x128xf32>
    %50 = arith.addf %38, %49 : vector<16x128xf32>
    %c0_33 = arith.constant 0 : index
    %c0_34 = arith.constant 0 : index
    %51 = vector.load %arg5[%c0_33, %c0_34] : memref<1x128xf32, #tpu.memory_space<vmem>>, vector<1x128xf32>
    %52 = vector.broadcast %51 : vector<1x128xf32> to vector<16x128xf32>
    %53 = arith.addf %50, %52 : vector<16x128xf32>
    %cst_35 = arith.constant 0.000000e+00 : f32
    %54 = vector.broadcast %cst_35 : f32 to vector<16x128xf32>
    %55 = arith.maximumf %53, %54 : vector<16x128xf32>
    %56 = arith.truncf %55 : vector<16x128xf32> to vector<16x128xbf16>
    %c0_36 = arith.constant 0 : index
    %c0_37 = arith.constant 0 : index
    %57 = vector.load %arg6[%c0_36, %c0_37] : memref<128x128xbf16, #tpu.memory_space<vmem>>, vector<128x128xbf16>
    %cst_38 = arith.constant dense<0.000000e+00> : vector<16x128xf32>
    %58 = tpu.matmul %56, %57, %cst_38 {dimension_numbers = #tpu.dot_dimension_numbers<[1], [0], [0], [1], [0, 0, 1, 1], [], []>} : vector<16x128xbf16>, vector<128x128xbf16>, vector<16x128xf32> -> vector<16x128xf32>
    %c0_39 = arith.constant 0 : index
    %c0_40 = arith.constant 0 : index
    %59 = vector.load %arg7[%c0_39, %c0_40] : memref<1x128xf32, #tpu.memory_space<vmem>>, vector<1x128xf32>
    %60 = vector.broadcast %59 : vector<1x128xf32> to vector<16x128xf32>
    %61 = arith.addf %58, %60 : vector<16x128xf32>
    %cst_41 = arith.constant 0.000000e+00 : f32
    %62 = vector.broadcast %cst_41 : f32 to vector<16x128xf32>
    %63 = arith.maximumf %61, %62 : vector<16x128xf32>
    %c0_42 = arith.constant 0 : index
    %c0_43 = arith.constant 0 : index
    %64 = vector.load %arg8[%c0_42, %c0_43] : memref<16x128xf32, #tpu.memory_space<vmem>>, vector<16x128xf32>
    tpu.vector_store %arg8[%c0_42, %c0_43], %63 {strides = array<i32>} : memref<16x128xf32, #tpu.memory_space<vmem>>, vector<16x128xf32>,
    return
  }
  func.func @transform_0(%arg0: i32) -> (i32, i32) {
    %c0_i32 = arith.constant 0 : i32
    %c0_i32_0 = arith.constant 0 : i32
    return %arg0, %c0_i32 : i32, i32
  }
  func.func @transform_1(%arg0: i32) -> (i32, i32) {
    %c0_i32 = arith.constant 0 : i32
    %c0_i32_0 = arith.constant 0 : i32
    %c0_i32_1 = arith.constant 0 : i32
    return %c0_i32, %c0_i32_0 : i32, i32
  }
  func.func @transform_2(%arg0: i32) -> (i32, i32) {
    %c0_i32 = arith.constant 0 : i32
    %c0_i32_0 = arith.constant 0 : i32
    %c0_i32_1 = arith.constant 0 : i32
    return %c0_i32, %c0_i32_0 : i32, i32
  }
  func.func @transform_3(%arg0: i32) -> (i32, i32, i32) {
    %c0_i32 = arith.constant 0 : i32
    %c0_i32_0 = arith.constant 0 : i32
    %c0_i32_1 = arith.constant 0 : i32
    %c0_i32_2 = arith.constant 0 : i32
    return %c0_i32, %c0_i32_0, %c0_i32_1 : i32, i32, i32
  }
  func.func @transform_4(%arg0: i32) -> (i32, i32) {
    %c0_i32 = arith.constant 0 : i32
    %c0_i32_0 = arith.constant 0 : i32
    %c0_i32_1 = arith.constant 0 : i32
    return %c0_i32, %c0_i32_0 : i32, i32
  }
  func.func @transform_5(%arg0: i32) -> (i32, i32) {
    %c0_i32 = arith.constant 0 : i32
    %c0_i32_0 = arith.constant 0 : i32
    %c0_i32_1 = arith.constant 0 : i32
    return %c0_i32, %c0_i32_0 : i32, i32
  }
  func.func @transform_6(%arg0: i32) -> (i32, i32) {
    %c0_i32 = arith.constant 0 : i32
    %c0_i32_0 = arith.constant 0 : i32
    %c0_i32_1 = arith.constant 0 : i32
    return %c0_i32, %c0_i32_0 : i32, i32
  }
  func.func @transform_7(%arg0: i32) -> (i32, i32) {
    %c0_i32 = arith.constant 0 : i32
    %c0_i32_0 = arith.constant 0 : i32
    return %arg0, %c0_i32 : i32, i32
  }
}

</mosaic_0001>

<llo_original>
// kernel: _lambda_.1
$region0: #{_lambda_.1}
  #allocation0 [shape = 'u32[]', space=smem, size = 0x4, offset = 0x4, fixed_abs, tag = 'smem constant byte address 0x4 - core index']
  #allocation1 [shape = 'u32[72,128]{1,0:T(1,128)}', space=vmem, size = 0x9000, scoped, tag = 'internal scratch']
  %s0 = inlined_call_operand.vmem [shape: bf16[32,2048], index: 0, kind: input, shape index: {}]
  %s1 = inlined_call_operand.vmem [shape: bf16[256,64], index: 1, kind: input, shape index: {}]
  %s2 = inlined_call_operand.vmem [shape: f32[1,64], index: 2, kind: input, shape index: {}]
  %s3 = inlined_call_operand.vmem [shape: bf16[4,64,128], index: 3, kind: input, shape index: {}]
  %s4 = inlined_call_operand.vmem [shape: f32[1,128], index: 4, kind: input, shape index: {}]
  %s5 = inlined_call_operand.vmem [shape: bf16[128,128], index: 5, kind: input, shape index: {}]
  %s6 = inlined_call_operand.vmem [shape: f32[1,128], index: 6, kind: input, shape index: {}]
  %s7 = inlined_call_operand.hbm [shape: f32[32,128], index: 7, kind: output, shape index: {}]
  %s8 = sld [smem:[#allocation0]]
  $region61: #{_lambda_.1} parent=0
    _
  %s10 = ssub.s32 1, %s8
  %s11 = scalar_select 0, %s10, %s8
  $region1: #{_lambda_.1} parent=0
    #allocation2 [shape = 'u8[16384]{0}', space=vmem, size = 0x4000, scoped, tag = 'output window, operand 0']
    #allocation3 [shape = 's32[2]{0}', space=sflag, size = 0x8, scoped, tag = 'scoped memory for _lambda_.1']
    %12 = vsyncpa [#allocation3], 0
    %s13 = scalar_lea.sflag [#allocation3], 1
    %14 = vsyncpa %s13, 0
    loop: start=0, step=1, limit=4
    $region2: #{_lambda_.1} parent=1 // loop_pre_header
      _
    $region3: #{_lambda_.1} parent=1 // loop_header
      %s16 = sphi 0, %s20
      %p17 = scmp.ge.s32.totalorder %s16, 4
      %s26 = sphi 0, %s28
      %s29 = sphi 0, %s26
      %s30 = sphi 0, %s29
      %s46 = sphi 0, %s30
      %s50 = sphi 0, %s50
      %s52 = sphi 0, %s50
      %s53 = sphi 0, %s52
      %s67 = sphi 0, %s53
      %s71 = sphi 0, %s71
      %s73 = sphi 0, %s71
      %s74 = sphi 0, %s73
      %s88 = sphi 0, %s74
      %s92 = sphi 0, %s92
      %s94 = sphi 0, %s92
      %s95 = sphi 0, %s94
      %s109 = sphi 0, %s95
      %s113 = sphi 0, %s113
      %s115 = sphi 0, %s113
      %s116 = sphi 0, %s115
      %s130 = sphi 0, %s116
      %s134 = sphi 0, %s134
      %s136 = sphi 0, %s134
      %s137 = sphi 0, %s136
      %s151 = sphi 0, %s137
      %s155 = sphi 0, %s155
      %s157 = sphi 0, %s155
      %s158 = sphi 0, %s157
      %s172 = sphi 0, %s158
      %s178 = sphi 0, %s180
      %s181 = sphi 0, %s178
      %s182 = sphi 0, %s181
      %s198 = sphi 0, %s182
    $region4: #{_lambda_.1} parent=1 // loop_header_branch
      %19 = sbr.rel (%p17) target = $region8
    $region5: #{_lambda_.1} parent=1 // loop_body
      %s21 = ssub.s32 %s16, 1
      %s22 = ssub.s32 %s16, 2
      %s23 = sadd.s32 %s16, 1
      %s24 = ssub.s32 %s16, %s23
      %p25 = scmp.eq.s32.totalorder %s24, 0
      %s27 = sadd.s32 %s26, 1
      %s28 = scalar_select %p25, %s26, %s27
      %p31 = pneg %p25
      %p32 = scmp.eq.s32.totalorder %s16, 1
      %p33 = por %p31, %p32
      %p34 = scmp.ne.s32.totalorder %s26, %s29
      %p35 = scmp.eq.s32.totalorder %s16, 0
      %p36 = por %p34, %p35
      %p37 = scmp.ne.s32.totalorder %s26, %s29
      %p38 = scmp.eq.s32.totalorder %s21, 1
      %p39 = por %p37, %p38
      %p40 = scmp.ne.s32.totalorder %s29, %s30
      %p41 = scmp.eq.s32.totalorder %s21, 0
      %p42 = por %p40, %p41
      %p43 = scmp.ne.s32.totalorder %s29, %s30
      %p44 = scmp.eq.s32.totalorder %s22, 1
      %p45 = por %p43, %p44
      %p47 = scmp.ne.s32.totalorder %s30, %s46
      %p48 = scmp.eq.s32.totalorder %s22, 0
      %p49 = por %p47, %p48
      %s51 = sadd.s32 %s50, 1
      %p54 = scmp.eq.s32.totalorder %s16, 1
      %p55 = scmp.ne.s32.totalorder %s50, %s52
      %p56 = scmp.eq.s32.totalorder %s16, 0
      %p57 = por %p55, %p56
      %p58 = scmp.ne.s32.totalorder %s50, %s52
      %p59 = scmp.eq.s32.totalorder %s21, 1
      %p60 = por %p58, %p59
      %p61 = scmp.ne.s32.totalorder %s52, %s53
      %p62 = scmp.eq.s32.totalorder %s21, 0
      %p63 = por %p61, %p62
      %p64 = scmp.ne.s32.totalorder %s52, %s53
      %p65 = scmp.eq.s32.totalorder %s22, 1
      %p66 = por %p64, %p65
      %p68 = scmp.ne.s32.totalorder %s53, %s67
      %p69 = scmp.eq.s32.totalorder %s22, 0
      %p70 = por %p68, %p69
      %s72 = sadd.s32 %s71, 1
      %p75 = scmp.eq.s32.totalorder %s16, 1
      %p76 = scmp.ne.s32.totalorder %s71, %s73
      %p77 = scmp.eq.s32.totalorder %s16, 0
      %p78 = por %p76, %p77
      %p79 = scmp.ne.s32.totalorder %s71, %s73
      %p80 = scmp.eq.s32.totalorder %s21, 1
      %p81 = por %p79, %p80
      %p82 = scmp.ne.s32.totalorder %s73, %s74
      %p83 = scmp.eq.s32.totalorder %s21, 0
      %p84 = por %p82, %p83
      %p85 = scmp.ne.s32.totalorder %s73, %s74
      %p86 = scmp.eq.s32.totalorder %s22, 1
      %p87 = por %p85, %p86
      %p89 = scmp.ne.s32.totalorder %s74, %s88
      %p90 = scmp.eq.s32.totalorder %s22, 0
      %p91 = por %p89, %p90
      %s93 = sadd.s32 %s92, 1
      %p96 = scmp.eq.s32.totalorder %s16, 1
      %p97 = scmp.ne.s32.totalorder %s92, %s94
      %p98 = scmp.eq.s32.totalorder %s16, 0
      %p99 = por %p97, %p98
      %p100 = scmp.ne.s32.totalorder %s92, %s94
      %p101 = scmp.eq.s32.totalorder %s21, 1
      %p102 = por %p100, %p101
      %p103 = scmp.ne.s32.totalorder %s94, %s95
      %p104 = scmp.eq.s32.totalorder %s21, 0
      %p105 = por %p103, %p104
      %p106 = scmp.ne.s32.totalorder %s94, %s95
      %p107 = scmp.eq.s32.totalorder %s22, 1
      %p108 = por %p106, %p107
      %p110 = scmp.ne.s32.totalorder %s95, %s109
      %p111 = scmp.eq.s32.totalorder %s22, 0
      %p112 = por %p110, %p111
      %s114 = sadd.s32 %s113, 1
      %p117 = scmp.eq.s32.totalorder %s16, 1
      %p118 = scmp.ne.s32.totalorder %s113, %s115
      %p119 = scmp.eq.s32.totalorder %s16, 0
      %p120 = por %p118, %p119
      %p121 = scmp.ne.s32.totalorder %s113, %s115
      %p122 = scmp.eq.s32.totalorder %s21, 1
      %p123 = por %p121, %p122
      %p124 = scmp.ne.s32.totalorder %s115, %s116
      %p125 = scmp.eq.s32.totalorder %s21, 0
      %p126 = por %p124, %p125
      %p127 = scmp.ne.s32.totalorder %s115, %s116
      %p128 = scmp.eq.s32.totalorder %s22, 1
      %p129 = por %p127, %p128
      %p131 = scmp.ne.s32.totalorder %s116, %s130
      %p132 = scmp.eq.s32.totalorder %s22, 0
      %p133 = por %p131, %p132
      %s135 = sadd.s32 %s134, 1
      %p138 = scmp.eq.s32.totalorder %s16, 1
      %p139 = scmp.ne.s32.totalorder %s134, %s136
      %p140 = scmp.eq.s32.totalorder %s16, 0
      %p141 = por %p139, %p140
      %p142 = scmp.ne.s32.totalorder %s134, %s136
      %p143 = scmp.eq.s32.totalorder %s21, 1
      %p144 = por %p142, %p143
      %p145 = scmp.ne.s32.totalorder %s136, %s137
      %p146 = scmp.eq.s32.totalorder %s21, 0
      %p147 = por %p145, %p146
      %p148 = scmp.ne.s32.totalorder %s136, %s137
      %p149 = scmp.eq.s32.totalorder %s22, 1
      %p150 = por %p148, %p149
      %p152 = scmp.ne.s32.totalorder %s137, %s151
      %p153 = scmp.eq.s32.totalorder %s22, 0
      %p154 = por %p152, %p153
      %s156 = sadd.s32 %s155, 1
      %p159 = scmp.eq.s32.totalorder %s16, 1
      %p160 = scmp.ne.s32.totalorder %s155, %s157
      %p161 = scmp.eq.s32.totalorder %s16, 0
      %p162 = por %p160, %p161
      %p163 = scmp.ne.s32.totalorder %s155, %s157
      %p164 = scmp.eq.s32.totalorder %s21, 1
      %p165 = por %p163, %p164
      %p166 = scmp.ne.s32.totalorder %s157, %s158
      %p167 = scmp.eq.s32.totalorder %s21, 0
      %p168 = por %p166, %p167
      %p169 = scmp.ne.s32.totalorder %s157, %s158
      %p170 = scmp.eq.s32.totalorder %s22, 1
      %p171 = por %p169, %p170
      %p173 = scmp.ne.s32.totalorder %s158, %s172
      %p174 = scmp.eq.s32.totalorder %s22, 0
      %p175 = por %p173, %p174
      %s176 = ssub.s32 %s16, %s23
      %p177 = scmp.eq.s32.totalorder %s176, 0
      %s179 = sadd.s32 %s178, 1
      %s180 = scalar_select %p177, %s178, %s179
      %p183 = pneg %p177
      %p184 = scmp.eq.s32.totalorder %s16, 1
      %p185 = por %p183, %p184
      %p186 = scmp.ne.s32.totalorder %s178, %s181
      %p187 = scmp.eq.s32.totalorder %s16, 0
      %p188 = por %p186, %p187
      %p189 = scmp.ne.s32.totalorder %s178, %s181
      %p190 = scmp.eq.s32.totalorder %s21, 1
      %p191 = por %p189, %p190
      %p192 = scmp.ne.s32.totalorder %s181, %s182
      %p193 = scmp.eq.s32.totalorder %s21, 0
      %p194 = por %p192, %p193
      %p195 = scmp.ne.s32.totalorder %s181, %s182
      %p196 = scmp.eq.s32.totalorder %s22, 1
      %p197 = por %p195, %p196
      %p199 = scmp.ne.s32.totalorder %s182, %s198
      %p200 = scmp.eq.s32.totalorder %s22, 0
      %p201 = por %p199, %p200
      %p202 = scmp.le.s32.totalorder 1, %s16
      %p203 = scmp.lt.s32.totalorder %s16, 3
      %p204 = pnand %p202, %p203
      %p205 = pneg %p204
      // Predicated region
      $region9: #{_lambda_.1} parent=5 // pred_check
        _
      $region10: #{_lambda_.1} parent=5 // pred_check_branch
        %207 = sbr.rel (%p204) target = $region12
      $region11: #{_lambda_.1} parent=5 // pred_region
        %s208 = ssub.s32 %s16, 1
        // Predicated region
        $region13: #{_lambda_.1} parent=11 // pred_check
          %p209 = pneg %p63
        $region14: #{_lambda_.1} parent=11 // pred_check_branch
          %211 = sbr.rel (%p209) target = $region16
        $region15: #{_lambda_.1} parent=11 // pred_region
          _
        $region16: #{_lambda_.1} parent=11 // pred_fallthru
          _
        // Predicated region
        $region17: #{_lambda_.1} parent=11 // pred_check
          %p212 = pneg %p84
        $region18: #{_lambda_.1} parent=11 // pred_check_branch
          %214 = sbr.rel (%p212) target = $region20
        $region19: #{_lambda_.1} parent=11 // pred_region
          _
        $region20: #{_lambda_.1} parent=11 // pred_fallthru
          _
        // Predicated region
        $region21: #{_lambda_.1} parent=11 // pred_check
          %p215 = pneg %p105
        $region22: #{_lambda_.1} parent=11 // pred_check_branch
          %217 = sbr.rel (%p215) target = $region24
        $region23: #{_lambda_.1} parent=11 // pred_region
          _
        $region24: #{_lambda_.1} parent=11 // pred_fallthru
          _
        // Predicated region
        $region25: #{_lambda_.1} parent=11 // pred_check
          %p218 = pneg %p126
        $region26: #{_lambda_.1} parent=11 // pred_check_branch
          %220 = sbr.rel (%p218) target = $region28
        $region27: #{_lambda_.1} parent=11 // pred_region
          _
        $region28: #{_lambda_.1} parent=11 // pred_fallthru
          _
        // Predicated region
        $region29: #{_lambda_.1} parent=11 // pred_check
          %p221 = pneg %p147
        $region30: #{_lambda_.1} parent=11 // pred_check_branch
          %223 = sbr.rel (%p221) target = $region32
        $region31: #{_lambda_.1} parent=11 // pred_region
          _
        $region32: #{_lambda_.1} parent=11 // pred_fallthru
          _
        // Predicated region
        $region33: #{_lambda_.1} parent=11 // pred_check
          %p224 = pneg %p168
        $region34: #{_lambda_.1} parent=11 // pred_check_branch
          %226 = sbr.rel (%p224) target = $region36
        $region35: #{_lambda_.1} parent=11 // pred_region
          _
        $region36: #{_lambda_.1} parent=11 // pred_fallthru
          _
      $region12: #{_lambda_.1} parent=5 // pred_fallthru
        _
      %p227 = scmp.lt.s32.totalorder %s16, 2
      // Predicated region
      $region37: #{_lambda_.1} parent=5 // pred_check
        %p228 = pneg %p227
      $region38: #{_lambda_.1} parent=5 // pred_check_branch
        %230 = sbr.rel (%p228) target = $region40
      $region39: #{_lambda_.1} parent=5 // pred_region
        // Predicated region
        $region41: #{_lambda_.1} parent=39 // pred_check
          %p231 = pneg %p36
        $region42: #{_lambda_.1} parent=39 // pred_check_branch
          %233 = sbr.rel (%p231) target = $region44
        $region43: #{_lambda_.1} parent=39 // pred_region
          %s234 = smul.u32 2, %s16
          %p235 = scmp.lt.s32.totalorder %s234, 3
          %s236 = scalar_select %p235, %s234, 3
          %s237 = smul.addr %s236, 16
          %s238 = smul.addr %s237, 4
          %s239 = scalar_lea.vmem %s0, %s238
          %s240 = smul.u32 2, %s16
        $region44: #{_lambda_.1} parent=39 // pred_fallthru
          _
      $region40: #{_lambda_.1} parent=5 // pred_fallthru
        _
      %p241 = scmp.le.s32.totalorder 1, %s16
      %p242 = scmp.lt.s32.totalorder %s16, 3
      %p243 = pnand %p241, %p242
      %p244 = pneg %p243
      // Predicated region
      $region45: #{_lambda_.1} parent=5 // pred_check
        _
      $region46: #{_lambda_.1} parent=5 // pred_check_branch
        %246 = sbr.rel (%p243) target = $region48
      $region47: #{_lambda_.1} parent=5 // pred_region
        %s247 = ssub.s32 %s16, 1
        %s248 = smul.u32 2, %s21
        %p249 = scmp.lt.s32.totalorder %s248, 3
        %s250 = scalar_select %p249, %s248, 3
        %s251 = smul.addr %s250, 16
        %s252 = smul.addr %s251, 4
        %s253 = scalar_lea.vmem %s0, %s252
        %p254 = pneg %p42
        %p255 = pneg %p39
        %p256 = pneg %p63
        %p257 = pneg %p60
        %p258 = pneg %p84
        %p259 = pneg %p81
        %p260 = pneg %p105
        %p261 = pneg %p102
        %p262 = pneg %p126
        %p263 = pneg %p123
        %p264 = pneg %p147
        %p265 = pneg %p144
        %p266 = pneg %p168
        %p267 = pneg %p165
        %p268 = pneg %p194
        %p269 = pneg %p191
        %s270 = sand.u32 %s181, 1
        %s271 = scalar_lea.sflag [#allocation3], %s270
        %s272 = sand.u32 %s181, 1
        %s273 = smul.addr %s272, 16
        %s274 = scalar_lea.vmem [#allocation2], %s273
        %s275 = smul.u32 2, %s21
        %p276 = scmp.lt.s32.totalorder %s275, 3
        %s277 = scalar_select %p276, %s275, 3
        %s278 = smul.addr %s277, 16
        %s279 = smul.addr %s278, 4
        %s280 = scalar_lea.vmem %s0, %s279
        %s281 = smul.u32 2, %s21
        %s282 = smul.u32 2, %s21
        %v284 = vld [vmem:[%s1] sm:$0xf]
        %v285 = vld [vmem:[%s1 + $0x4] sm:$0xf]
        %v286 = vld [vmem:[%s1 + $0x8] sm:$0xf]
        %v287 = vld [vmem:[%s1 + $0xc] sm:$0xf]
        %v288 = vld [vmem:[%s1 + $0x10] sm:$0xf]
        %v289 = vld [vmem:[%s1 + $0x14] sm:$0xf]
        %v290 = vld [vmem:[%s1 + $0x18] sm:$0xf]
        %v291 = vld [vmem:[%s1 + $0x1c] sm:$0xf]
        %v292 = vld [vmem:[%s1 + $0x20] sm:$0xf]
        %v293 = vld [vmem:[%s1 + $0x24] sm:$0xf]
        %v294 = vld [vmem:[%s1 + $0x28] sm:$0xf]
        %v295 = vld [vmem:[%s1 + $0x2c] sm:$0xf]
        %v296 = vld [vmem:[%s1 + $0x30] sm:$0xf]
        %v297 = vld [vmem:[%s1 + $0x34] sm:$0xf]
        %v298 = vld [vmem:[%s1 + $0x38] sm:$0xf]
        %v299 = vld [vmem:[%s1 + $0x3c] sm:$0xf]
        %v300 = vld [vmem:[%s1 + $0x40] sm:$0xf]
        %v301 = vld [vmem:[%s1 + $0x44] sm:$0xf]
        %v302 = vld [vmem:[%s1 + $0x48] sm:$0xf]
        %v303 = vld [vmem:[%s1 + $0x4c] sm:$0xf]
        %v304 = vld [vmem:[%s1 + $0x50] sm:$0xf]
        %v305 = vld [vmem:[%s1 + $0x54] sm:$0xf]
        %v306 = vld [vmem:[%s1 + $0x58] sm:$0xf]
        %v307 = vld [vmem:[%s1 + $0x5c] sm:$0xf]
        %v308 = vld [vmem:[%s1 + $0x60] sm:$0xf]
        %v309 = vld [vmem:[%s1 + $0x64] sm:$0xf]
        %v310 = vld [vmem:[%s1 + $0x68] sm:$0xf]
        %v311 = vld [vmem:[%s1 + $0x6c] sm:$0xf]
        %v312 = vld [vmem:[%s1 + $0x70] sm:$0xf]
        %v313 = vld [vmem:[%s1 + $0x74] sm:$0xf]
        %v314 = vld [vmem:[%s1 + $0x78] sm:$0xf]
        %v315 = vld [vmem:[%s1 + $0x7c] sm:$0xf]
        %v316 = vld [vmem:[%s2] sm:$0x1]
        %v317 = vld [vmem:[%s280] sm:$0xff]
        %v318 = vld [vmem:[%s280 + $0x40] sm:$0xff]
        %v319 = vld [vmem:[%s280 + $0x8] sm:$0xff]
        %v320 = vld [vmem:[%s280 + $0x48] sm:$0xff]
        %v323 = vunpack.c.l.b16 %v317
        %v324 = vunpack.c.h.b16 %v317
        %v325 = vunpack.c.l.b16 %v318
        %v326 = vunpack.c.h.b16 %v318
        %v327 = vpack.c.b16 %v325, %v323
        %v328 = vpack.c.b16 %v326, %v324
        %v363 = vunpack.c.l.b16 %v284
        %v364 = vunpack.c.l.b16 %v285
        %v365 = vunpack.c.l.b16 %v286
        %v366 = vunpack.c.l.b16 %v287
        %v367 = vunpack.c.l.b16 %v288
        %v368 = vunpack.c.l.b16 %v289
        %v369 = vunpack.c.l.b16 %v290
        %v370 = vunpack.c.l.b16 %v291
        %v371 = vunpack.c.l.b16 %v292
        %v372 = vunpack.c.l.b16 %v293
        %v373 = vunpack.c.l.b16 %v294
        %v374 = vunpack.c.l.b16 %v295
        %v375 = vunpack.c.l.b16 %v296
        %v376 = vunpack.c.l.b16 %v297
        %v377 = vunpack.c.l.b16 %v298
        %v378 = vunpack.c.l.b16 %v299
        %v379 = vunpack.c.l.b16 %v300
        %v380 = vunpack.c.l.b16 %v301
        %v381 = vunpack.c.l.b16 %v302
        %v382 = vunpack.c.l.b16 %v303
        %v383 = vunpack.c.l.b16 %v304
        %v384 = vunpack.c.l.b16 %v305
        %v385 = vunpack.c.l.b16 %v306
        %v386 = vunpack.c.l.b16 %v307
        %v387 = vunpack.c.l.b16 %v308
        %v388 = vunpack.c.l.b16 %v309
        %v389 = vunpack.c.l.b16 %v310
        %v390 = vunpack.c.l.b16 %v311
        %v391 = vunpack.c.l.b16 %v312
        %v392 = vunpack.c.l.b16 %v313
        %v393 = vunpack.c.l.b16 %v314
        %v394 = vunpack.c.l.b16 %v315
        %v395 = vpack.c.b16 %v364, %v363
        %v396 = vpack.c.b16 %v366, %v365
        %v397 = vpack.c.b16 %v368, %v367
        %v398 = vpack.c.b16 %v370, %v369
        %v399 = vpack.c.b16 %v372, %v371
        %v400 = vpack.c.b16 %v374, %v373
        %v401 = vpack.c.b16 %v376, %v375
        %v402 = vpack.c.b16 %v378, %v377
        %v403 = vpack.c.b16 %v380, %v379
        %v404 = vpack.c.b16 %v382, %v381
        %v405 = vpack.c.b16 %v384, %v383
        %v406 = vpack.c.b16 %v386, %v385
        %v407 = vpack.c.b16 %v388, %v387
        %v408 = vpack.c.b16 %v390, %v389
        %v409 = vpack.c.b16 %v392, %v391
        %v410 = vpack.c.b16 %v394, %v393
        %427 = vmatpush.bf16.msra.mxu0 %v402
        %428 = vmatpush.bf16.msra.mxu0 %v401
        %429 = vmatpush.bf16.msra.mxu0 %v400
        %430 = vmatpush.bf16.msra.mxu0 %v399
        %431 = vmatpush.bf16.msra.mxu0 %v398
        %432 = vmatpush.bf16.msra.mxu0 %v397
        %433 = vmatpush.bf16.msra.mxu0 %v396
        %434 = vmatpush.bf16.msra.mxu0 %v395
        %435 = vmatmul.bf16.gmra.mxu0 %v327
        %v436 = vpop.f32.mrf.mxu0
        %v437 = vadd.f32 0.0, %v436
        %v438 = vpop.f32.mrf.mxu0
        %v439 = vadd.f32 0.0, %v438
        %440 = vdwg.mxu0
        %441 = vmatpush.bf16.msra.mxu0 %v410
        %442 = vmatpush.bf16.msra.mxu0 %v409
        %443 = vmatpush.bf16.msra.mxu0 %v408
        %444 = vmatpush.bf16.msra.mxu0 %v407
        %445 = vmatpush.bf16.msra.mxu0 %v406
        %446 = vmatpush.bf16.msra.mxu0 %v405
        %447 = vmatpush.bf16.msra.mxu0 %v404
        %448 = vmatpush.bf16.msra.mxu0 %v403
        %449 = vmatmul.bf16.gmra.mxu0 %v328
        %v450 = vpop.f32.mrf.mxu0
        %v451 = vadd.f32 %v437, %v450
        %v452 = vpop.f32.mrf.mxu0
        %v453 = vadd.f32 %v439, %v452
        %454 = vdwg.mxu0
        %v457 = vunpack.c.l.b16 %v319
        %v458 = vunpack.c.h.b16 %v319
        %v459 = vunpack.c.l.b16 %v320
        %v460 = vunpack.c.h.b16 %v320
        %v461 = vpack.c.b16 %v459, %v457
        %v462 = vpack.c.b16 %v460, %v458
        %465 = vmatpush.bf16.msra.mxu0 %v402
        %466 = vmatpush.bf16.msra.mxu0 %v401
        %467 = vmatpush.bf16.msra.mxu0 %v400
        %468 = vmatpush.bf16.msra.mxu0 %v399
        %469 = vmatpush.bf16.msra.mxu0 %v398
        %470 = vmatpush.bf16.msra.mxu0 %v397
        %471 = vmatpush.bf16.msra.mxu0 %v396
        %472 = vmatpush.bf16.msra.mxu0 %v395
        %473 = vmatmul.bf16.gmra.mxu0 %v461
        %v474 = vpop.f32.mrf.mxu0
        %v475 = vadd.f32 0.0, %v474
        %v476 = vpop.f32.mrf.mxu0
        %v477 = vadd.f32 0.0, %v476
        %478 = vdwg.mxu0
        %479 = vmatpush.bf16.msra.mxu0 %v410
        %480 = vmatpush.bf16.msra.mxu0 %v409
        %481 = vmatpush.bf16.msra.mxu0 %v408
        %482 = vmatpush.bf16.msra.mxu0 %v407
        %483 = vmatpush.bf16.msra.mxu0 %v406
        %484 = vmatpush.bf16.msra.mxu0 %v405
        %485 = vmatpush.bf16.msra.mxu0 %v404
        %486 = vmatpush.bf16.msra.mxu0 %v403
        %487 = vmatmul.bf16.gmra.mxu0 %v462
        %v488 = vpop.f32.mrf.mxu0
        %v489 = vadd.f32 %v475, %v488
        %v490 = vpop.f32.mrf.mxu0
        %v491 = vadd.f32 %v477, %v490
        %492 = vdwg.mxu0
        %v493 = vmax.f32 %v451, %v489
        %v494 = vmax.f32 %v453, %v491
        %v496 = vperm.slane %v316, 0
        %v498 = vadd.f32 %v493, %v496
        %v499 = vadd.f32 %v494, %v496
        %v500 = vpack.c.bf16 %v499, %v498
        %v501 = vld [vmem:[%s3] sm:$0xf]
        %v502 = vld [vmem:[%s3 + $0x4] sm:$0xf]
        %v503 = vld [vmem:[%s3 + $0x8] sm:$0xf]
        %v504 = vld [vmem:[%s3 + $0xc] sm:$0xf]
        %v505 = vld [vmem:[%s3 + $0x10] sm:$0xf]
        %v506 = vld [vmem:[%s3 + $0x14] sm:$0xf]
        %v507 = vld [vmem:[%s3 + $0x18] sm:$0xf]
        %v508 = vld [vmem:[%s3 + $0x1c] sm:$0xf]
        %v509 = vld [vmem:[%s280 + $0x10] sm:$0xff]
        %v510 = vld [vmem:[%s280 + $0x50] sm:$0xff]
        %v511 = vld [vmem:[%s280 + $0x18] sm:$0xff]
        %v512 = vld [vmem:[%s280 + $0x58] sm:$0xff]
        %v515 = vunpack.c.l.b16 %v509
        %v516 = vunpack.c.h.b16 %v509
        %v517 = vunpack.c.l.b16 %v510
        %v518 = vunpack.c.h.b16 %v510
        %v519 = vpack.c.b16 %v517, %v515
        %v520 = vpack.c.b16 %v518, %v516
        %523 = vmatpush.bf16.msra.mxu0 %v402
        %524 = vmatpush.bf16.msra.mxu0 %v401
        %525 = vmatpush.bf16.msra.mxu0 %v400
        %526 = vmatpush.bf16.msra.mxu0 %v399
        %527 = vmatpush.bf16.msra.mxu0 %v398
        %528 = vmatpush.bf16.msra.mxu0 %v397
        %529 = vmatpush.bf16.msra.mxu0 %v396
        %530 = vmatpush.bf16.msra.mxu0 %v395
        %531 = vmatmul.bf16.gmra.mxu0 %v519
        %v532 = vpop.f32.mrf.mxu0
        %v533 = vadd.f32 0.0, %v532
        %v534 = vpop.f32.mrf.mxu0
        %v535 = vadd.f32 0.0, %v534
        %536 = vdwg.mxu0
        %537 = vmatpush.bf16.msra.mxu0 %v410
        %538 = vmatpush.bf16.msra.mxu0 %v409
        %539 = vmatpush.bf16.msra.mxu0 %v408
        %540 = vmatpush.bf16.msra.mxu0 %v407
        %541 = vmatpush.bf16.msra.mxu0 %v406
        %542 = vmatpush.bf16.msra.mxu0 %v405
        %543 = vmatpush.bf16.msra.mxu0 %v404
        %544 = vmatpush.bf16.msra.mxu0 %v403
        %545 = vmatmul.bf16.gmra.mxu0 %v520
        %v546 = vpop.f32.mrf.mxu0
        %v547 = vadd.f32 %v533, %v546
        %v548 = vpop.f32.mrf.mxu0
        %v549 = vadd.f32 %v535, %v548
        %550 = vdwg.mxu0
        %v553 = vunpack.c.l.b16 %v511
        %v554 = vunpack.c.h.b16 %v511
        %v555 = vunpack.c.l.b16 %v512
        %v556 = vunpack.c.h.b16 %v512
        %v557 = vpack.c.b16 %v555, %v553
        %v558 = vpack.c.b16 %v556, %v554
        %561 = vmatpush.bf16.msra.mxu0 %v402
        %562 = vmatpush.bf16.msra.mxu0 %v401
        %563 = vmatpush.bf16.msra.mxu0 %v400
        %564 = vmatpush.bf16.msra.mxu0 %v399
        %565 = vmatpush.bf16.msra.mxu0 %v398
        %566 = vmatpush.bf16.msra.mxu0 %v397
        %567 = vmatpush.bf16.msra.mxu0 %v396
        %568 = vmatpush.bf16.msra.mxu0 %v395
        %569 = vmatmul.bf16.gmra.mxu0 %v557
        %v570 = vpop.f32.mrf.mxu0
        %v571 = vadd.f32 0.0, %v570
        %v572 = vpop.f32.mrf.mxu0
        %v573 = vadd.f32 0.0, %v572
        %574 = vdwg.mxu0
        %575 = vmatpush.bf16.msra.mxu0 %v410
        %576 = vmatpush.bf16.msra.mxu0 %v409
        %577 = vmatpush.bf16.msra.mxu0 %v408
        %578 = vmatpush.bf16.msra.mxu0 %v407
        %579 = vmatpush.bf16.msra.mxu0 %v406
        %580 = vmatpush.bf16.msra.mxu0 %v405
        %581 = vmatpush.bf16.msra.mxu0 %v404
        %582 = vmatpush.bf16.msra.mxu0 %v403
        %583 = vmatmul.bf16.gmra.mxu0 %v558
        %v584 = vpop.f32.mrf.mxu0
        %v585 = vadd.f32 %v571, %v584
        %v586 = vpop.f32.mrf.mxu0
        %v587 = vadd.f32 %v573, %v586
        %588 = vdwg.mxu0
        %v589 = vmax.f32 %v547, %v585
        %v590 = vmax.f32 %v549, %v587
        %v591 = vadd.f32 %v589, %v496
        %v592 = vadd.f32 %v590, %v496
        %v593 = vpack.c.bf16 %v592, %v591
        %s594 = scalar_lea.vmem %s3, 32
        %v595 = vld [vmem:[%s594] sm:$0xf]
        %v596 = vld [vmem:[%s594 + $0x4] sm:$0xf]
        %v597 = vld [vmem:[%s594 + $0x8] sm:$0xf]
        %v598 = vld [vmem:[%s594 + $0xc] sm:$0xf]
        %v599 = vld [vmem:[%s594 + $0x10] sm:$0xf]
        %v600 = vld [vmem:[%s594 + $0x14] sm:$0xf]
        %v601 = vld [vmem:[%s594 + $0x18] sm:$0xf]
        %v602 = vld [vmem:[%s594 + $0x1c] sm:$0xf]
        %v611 = vunpack.c.l.b16 %v595
        %v612 = vunpack.c.l.b16 %v596
        %v613 = vunpack.c.l.b16 %v597
        %v614 = vunpack.c.l.b16 %v598
        %v615 = vunpack.c.l.b16 %v599
        %v616 = vunpack.c.l.b16 %v600
        %v617 = vunpack.c.l.b16 %v601
        %v618 = vunpack.c.l.b16 %v602
        %v619 = vpack.c.b16 %v612, %v611
        %v620 = vpack.c.b16 %v614, %v613
        %v621 = vpack.c.b16 %v616, %v615
        %v622 = vpack.c.b16 %v618, %v617
        %vm627 = vcmask 523264
        %v629 = vsel %vm627, %v593, 0
        %631 = vmatpush.bf16.msra.mxu0 0
        %632 = vmatpush.bf16.msra.mxu0 0
        %633 = vmatpush.bf16.msra.mxu0 0
        %634 = vmatpush.bf16.msra.mxu0 0
        %635 = vmatpush.bf16.msra.mxu0 %v622
        %636 = vmatpush.bf16.msra.mxu0 %v621
        %637 = vmatpush.bf16.msra.mxu0 %v620
        %638 = vmatpush.bf16.msra.mxu0 %v619
        %639 = vmatmul.bf16.gmra.mxu0 %v629
        %v640 = vpop.f32.mrf.mxu0
        %v641 = vadd.f32 0.0, %v640
        %v642 = vpop.f32.mrf.mxu0
        %v643 = vadd.f32 0.0, %v642
        %644 = vdwg.mxu0
        %v653 = vunpack.c.l.b16 %v501
        %v654 = vunpack.c.l.b16 %v502
        %v655 = vunpack.c.l.b16 %v503
        %v656 = vunpack.c.l.b16 %v504
        %v657 = vunpack.c.l.b16 %v505
        %v658 = vunpack.c.l.b16 %v506
        %v659 = vunpack.c.l.b16 %v507
        %v660 = vunpack.c.l.b16 %v508
        %v661 = vpack.c.b16 %v654, %v653
        %v662 = vpack.c.b16 %v656, %v655
        %v663 = vpack.c.b16 %v658, %v657
        %v664 = vpack.c.b16 %v660, %v659
        %v670 = vsel %vm627, %v500, 0
        %672 = vmatpush.bf16.msra.mxu0 0
        %673 = vmatpush.bf16.msra.mxu0 0
        %674 = vmatpush.bf16.msra.mxu0 0
        %675 = vmatpush.bf16.msra.mxu0 0
        %676 = vmatpush.bf16.msra.mxu0 %v664
        %677 = vmatpush.bf16.msra.mxu0 %v663
        %678 = vmatpush.bf16.msra.mxu0 %v662
        %679 = vmatpush.bf16.msra.mxu0 %v661
        %680 = vmatmul.bf16.gmra.mxu0 %v670
        %v681 = vpop.f32.mrf.mxu0
        %v682 = vadd.f32 %v641, %v681
        %v683 = vpop.f32.mrf.mxu0
        %v684 = vadd.f32 %v643, %v683
        %685 = vdwg.mxu0
        %v686 = vld [vmem:[%s280 + $0x20] sm:$0xff]
        %v687 = vld [vmem:[%s280 + $0x60] sm:$0xff]
        %v688 = vld [vmem:[%s280 + $0x28] sm:$0xff]
        %v689 = vld [vmem:[%s280 + $0x68] sm:$0xff]
        %v692 = vunpack.c.l.b16 %v686
        %v693 = vunpack.c.h.b16 %v686
        %v694 = vunpack.c.l.b16 %v687
        %v695 = vunpack.c.h.b16 %v687
        %v696 = vpack.c.b16 %v694, %v692
        %v697 = vpack.c.b16 %v695, %v693
        %700 = vmatpush.bf16.msra.mxu0 %v402
        %701 = vmatpush.bf16.msra.mxu0 %v401
        %702 = vmatpush.bf16.msra.mxu0 %v400
        %703 = vmatpush.bf16.msra.mxu0 %v399
        %704 = vmatpush.bf16.msra.mxu0 %v398
        %705 = vmatpush.bf16.msra.mxu0 %v397
        %706 = vmatpush.bf16.msra.mxu0 %v396
        %707 = vmatpush.bf16.msra.mxu0 %v395
        %708 = vmatmul.bf16.gmra.mxu0 %v696
        %v709 = vpop.f32.mrf.mxu0
        %v710 = vadd.f32 0.0, %v709
        %v711 = vpop.f32.mrf.mxu0
        %v712 = vadd.f32 0.0, %v711
        %713 = vdwg.mxu0
        %714 = vmatpush.bf16.msra.mxu0 %v410
        %715 = vmatpush.bf16.msra.mxu0 %v409
        %716 = vmatpush.bf16.msra.mxu0 %v408
        %717 = vmatpush.bf16.msra.mxu0 %v407
        %718 = vmatpush.bf16.msra.mxu0 %v406
        %719 = vmatpush.bf16.msra.mxu0 %v405
        %720 = vmatpush.bf16.msra.mxu0 %v404
        %721 = vmatpush.bf16.msra.mxu0 %v403
        %722 = vmatmul.bf16.gmra.mxu0 %v697
        %v723 = vpop.f32.mrf.mxu0
        %v724 = vadd.f32 %v710, %v723
        %v725 = vpop.f32.mrf.mxu0
        %v726 = vadd.f32 %v712, %v725
        %727 = vdwg.mxu0
        %v730 = vunpack.c.l.b16 %v688
        %v731 = vunpack.c.h.b16 %v688
        %v732 = vunpack.c.l.b16 %v689
        %v733 = vunpack.c.h.b16 %v689
        %v734 = vpack.c.b16 %v732, %v730
        %v735 = vpack.c.b16 %v733, %v731
        %738 = vmatpush.bf16.msra.mxu0 %v402
        %739 = vmatpush.bf16.msra.mxu0 %v401
        %740 = vmatpush.bf16.msra.mxu0 %v400
        %741 = vmatpush.bf16.msra.mxu0 %v399
        %742 = vmatpush.bf16.msra.mxu0 %v398
        %743 = vmatpush.bf16.msra.mxu0 %v397
        %744 = vmatpush.bf16.msra.mxu0 %v396
        %745 = vmatpush.bf16.msra.mxu0 %v395
        %746 = vmatmul.bf16.gmra.mxu0 %v734
        %v747 = vpop.f32.mrf.mxu0
        %v748 = vadd.f32 0.0, %v747
        %v749 = vpop.f32.mrf.mxu0
        %v750 = vadd.f32 0.0, %v749
        %751 = vdwg.mxu0
        %752 = vmatpush.bf16.msra.mxu0 %v410
        %753 = vmatpush.bf16.msra.mxu0 %v409
        %754 = vmatpush.bf16.msra.mxu0 %v408
        %755 = vmatpush.bf16.msra.mxu0 %v407
        %756 = vmatpush.bf16.msra.mxu0 %v406
        %757 = vmatpush.bf16.msra.mxu0 %v405
        %758 = vmatpush.bf16.msra.mxu0 %v404
        %759 = vmatpush.bf16.msra.mxu0 %v403
        %760 = vmatmul.bf16.gmra.mxu0 %v735
        %v761 = vpop.f32.mrf.mxu0
        %v762 = vadd.f32 %v748, %v761
        %v763 = vpop.f32.mrf.mxu0
        %v764 = vadd.f32 %v750, %v763
        %765 = vdwg.mxu0
        %v766 = vmax.f32 %v724, %v762
        %v767 = vmax.f32 %v726, %v764
        %v768 = vadd.f32 %v766, %v496
        %v769 = vadd.f32 %v767, %v496
        %v770 = vpack.c.bf16 %v769, %v768
        %s771 = scalar_lea.vmem %s3, 64
        %v772 = vld [vmem:[%s771] sm:$0xf]
        %v773 = vld [vmem:[%s771 + $0x4] sm:$0xf]
        %v774 = vld [vmem:[%s771 + $0x8] sm:$0xf]
        %v775 = vld [vmem:[%s771 + $0xc] sm:$0xf]
        %v776 = vld [vmem:[%s771 + $0x10] sm:$0xf]
        %v777 = vld [vmem:[%s771 + $0x14] sm:$0xf]
        %v778 = vld [vmem:[%s771 + $0x18] sm:$0xf]
        %v779 = vld [vmem:[%s771 + $0x1c] sm:$0xf]
        %v788 = vunpack.c.l.b16 %v772
        %v789 = vunpack.c.l.b16 %v773
        %v790 = vunpack.c.l.b16 %v774
        %v791 = vunpack.c.l.b16 %v775
        %v792 = vunpack.c.l.b16 %v776
        %v793 = vunpack.c.l.b16 %v777
        %v794 = vunpack.c.l.b16 %v778
        %v795 = vunpack.c.l.b16 %v779
        %v796 = vpack.c.b16 %v789, %v788
        %v797 = vpack.c.b16 %v791, %v790
        %v798 = vpack.c.b16 %v793, %v792
        %v799 = vpack.c.b16 %v795, %v794
        %v805 = vsel %vm627, %v770, 0
        %807 = vmatpush.bf16.msra.mxu0 0
        %808 = vmatpush.bf16.msra.mxu0 0
        %809 = vmatpush.bf16.msra.mxu0 0
        %810 = vmatpush.bf16.msra.mxu0 0
        %811 = vmatpush.bf16.msra.mxu0 %v799
        %812 = vmatpush.bf16.msra.mxu0 %v798
        %813 = vmatpush.bf16.msra.mxu0 %v797
        %814 = vmatpush.bf16.msra.mxu0 %v796
        %815 = vmatmul.bf16.gmra.mxu0 %v805
        %v816 = vpop.f32.mrf.mxu0
        %v817 = vadd.f32 0.0, %v816
        %v818 = vpop.f32.mrf.mxu0
        %v819 = vadd.f32 0.0, %v818
        %820 = vdwg.mxu0
        %v821 = vadd.f32 %v682, %v817
        %v822 = vadd.f32 %v684, %v819
        %v823 = vld [vmem:[%s280 + $0x30] sm:$0xff]
        %v824 = vld [vmem:[%s280 + $0x70] sm:$0xff]
        %v825 = vld [vmem:[%s280 + $0x38] sm:$0xff]
        %v826 = vld [vmem:[%s280 + $0x78] sm:$0xff]
        %v829 = vunpack.c.l.b16 %v823
        %v830 = vunpack.c.h.b16 %v823
        %v831 = vunpack.c.l.b16 %v824
        %v832 = vunpack.c.h.b16 %v824
        %v833 = vpack.c.b16 %v831, %v829
        %v834 = vpack.c.b16 %v832, %v830
        %837 = vmatpush.bf16.msra.mxu0 %v402
        %838 = vmatpush.bf16.msra.mxu0 %v401
        %839 = vmatpush.bf16.msra.mxu0 %v400
        %840 = vmatpush.bf16.msra.mxu0 %v399
        %841 = vmatpush.bf16.msra.mxu0 %v398
        %842 = vmatpush.bf16.msra.mxu0 %v397
        %843 = vmatpush.bf16.msra.mxu0 %v396
        %844 = vmatpush.bf16.msra.mxu0 %v395
        %845 = vmatmul.bf16.gmra.mxu0 %v833
        %v846 = vpop.f32.mrf.mxu0
        %v847 = vadd.f32 0.0, %v846
        %v848 = vpop.f32.mrf.mxu0
        %v849 = vadd.f32 0.0, %v848
        %850 = vdwg.mxu0
        %851 = vmatpush.bf16.msra.mxu0 %v410
        %852 = vmatpush.bf16.msra.mxu0 %v409
        %853 = vmatpush.bf16.msra.mxu0 %v408
        %854 = vmatpush.bf16.msra.mxu0 %v407
        %855 = vmatpush.bf16.msra.mxu0 %v406
        %856 = vmatpush.bf16.msra.mxu0 %v405
        %857 = vmatpush.bf16.msra.mxu0 %v404
        %858 = vmatpush.bf16.msra.mxu0 %v403
        %859 = vmatmul.bf16.gmra.mxu0 %v834
        %v860 = vpop.f32.mrf.mxu0
        %v861 = vadd.f32 %v847, %v860
        %v862 = vpop.f32.mrf.mxu0
        %v863 = vadd.f32 %v849, %v862
        %864 = vdwg.mxu0
        %v867 = vunpack.c.l.b16 %v825
        %v868 = vunpack.c.h.b16 %v825
        %v869 = vunpack.c.l.b16 %v826
        %v870 = vunpack.c.h.b16 %v826
        %v871 = vpack.c.b16 %v869, %v867
        %v872 = vpack.c.b16 %v870, %v868
        %875 = vmatpush.bf16.msra.mxu0 %v402
        %876 = vmatpush.bf16.msra.mxu0 %v401
        %877 = vmatpush.bf16.msra.mxu0 %v400
        %878 = vmatpush.bf16.msra.mxu0 %v399
        %879 = vmatpush.bf16.msra.mxu0 %v398
        %880 = vmatpush.bf16.msra.mxu0 %v397
        %881 = vmatpush.bf16.msra.mxu0 %v396
        %882 = vmatpush.bf16.msra.mxu0 %v395
        %883 = vmatmul.bf16.gmra.mxu0 %v871
        %v884 = vpop.f32.mrf.mxu0
        %v885 = vadd.f32 0.0, %v884
        %v886 = vpop.f32.mrf.mxu0
        %v887 = vadd.f32 0.0, %v886
        %888 = vdwg.mxu0
        %889 = vmatpush.bf16.msra.mxu0 %v410
        %890 = vmatpush.bf16.msra.mxu0 %v409
        %891 = vmatpush.bf16.msra.mxu0 %v408
        %892 = vmatpush.bf16.msra.mxu0 %v407
        %893 = vmatpush.bf16.msra.mxu0 %v406
        %894 = vmatpush.bf16.msra.mxu0 %v405
        %895 = vmatpush.bf16.msra.mxu0 %v404
        %896 = vmatpush.bf16.msra.mxu0 %v403
        %897 = vmatmul.bf16.gmra.mxu0 %v872
        %v898 = vpop.f32.mrf.mxu0
        %v899 = vadd.f32 %v885, %v898
        %v900 = vpop.f32.mrf.mxu0
        %v901 = vadd.f32 %v887, %v900
        %902 = vdwg.mxu0
        %v903 = vmax.f32 %v861, %v899
        %v904 = vmax.f32 %v863, %v901
        %v905 = vadd.f32 %v903, %v496
        %v906 = vadd.f32 %v904, %v496
        %v907 = vpack.c.bf16 %v906, %v905
        %s908 = scalar_lea.vmem %s3, 96
        %v909 = vld [vmem:[%s908] sm:$0xf]
        %v910 = vld [vmem:[%s908 + $0x4] sm:$0xf]
        %v911 = vld [vmem:[%s908 + $0x8] sm:$0xf]
        %v912 = vld [vmem:[%s908 + $0xc] sm:$0xf]
        %v913 = vld [vmem:[%s908 + $0x10] sm:$0xf]
        %v914 = vld [vmem:[%s908 + $0x14] sm:$0xf]
        %v915 = vld [vmem:[%s908 + $0x18] sm:$0xf]
        %v916 = vld [vmem:[%s908 + $0x1c] sm:$0xf]
        %v925 = vunpack.c.l.b16 %v909
        %v926 = vunpack.c.l.b16 %v910
        %v927 = vunpack.c.l.b16 %v911
        %v928 = vunpack.c.l.b16 %v912
        %v929 = vunpack.c.l.b16 %v913
        %v930 = vunpack.c.l.b16 %v914
        %v931 = vunpack.c.l.b16 %v915
        %v932 = vunpack.c.l.b16 %v916
        %v933 = vpack.c.b16 %v926, %v925
        %v934 = vpack.c.b16 %v928, %v927
        %v935 = vpack.c.b16 %v930, %v929
        %v936 = vpack.c.b16 %v932, %v931
        %v942 = vsel %vm627, %v907, 0
        %944 = vmatpush.bf16.msra.mxu0 0
        %945 = vmatpush.bf16.msra.mxu0 0
        %946 = vmatpush.bf16.msra.mxu0 0
        %947 = vmatpush.bf16.msra.mxu0 0
        %948 = vmatpush.bf16.msra.mxu0 %v936
        %949 = vmatpush.bf16.msra.mxu0 %v935
        %950 = vmatpush.bf16.msra.mxu0 %v934
        %951 = vmatpush.bf16.msra.mxu0 %v933
        %952 = vmatmul.bf16.gmra.mxu0 %v942
        %v953 = vpop.f32.mrf.mxu0
        %v954 = vadd.f32 0.0, %v953
        %v955 = vpop.f32.mrf.mxu0
        %v956 = vadd.f32 0.0, %v955
        %957 = vdwg.mxu0
        %v958 = vadd.f32 %v821, %v954
        %v959 = vadd.f32 %v822, %v956
        %v960 = vld [vmem:[%s4] sm:$0x1]
        %v962 = vperm.slane %v960, 0
        %v964 = vadd.f32 %v958, %v962
        %v965 = vadd.f32 %v959, %v962
        %v966 = vmax.f32 %v964, 0.0
        %v967 = vmax.f32 %v965, 0.0
        %v968 = vpack.c.bf16 %v967, %v966
        %v969 = vld [vmem:[%s5] sm:$0xf]
        %v970 = vld [vmem:[%s5 + $0x4] sm:$0xf]
        %v971 = vld [vmem:[%s5 + $0x8] sm:$0xf]
        %v972 = vld [vmem:[%s5 + $0xc] sm:$0xf]
        %v973 = vld [vmem:[%s5 + $0x10] sm:$0xf]
        %v974 = vld [vmem:[%s5 + $0x14] sm:$0xf]
        %v975 = vld [vmem:[%s5 + $0x18] sm:$0xf]
        %v976 = vld [vmem:[%s5 + $0x1c] sm:$0xf]
        %v977 = vld [vmem:[%s5 + $0x20] sm:$0xf]
        %v978 = vld [vmem:[%s5 + $0x24] sm:$0xf]
        %v979 = vld [vmem:[%s5 + $0x28] sm:$0xf]
        %v980 = vld [vmem:[%s5 + $0x2c] sm:$0xf]
        %v981 = vld [vmem:[%s5 + $0x30] sm:$0xf]
        %v982 = vld [vmem:[%s5 + $0x34] sm:$0xf]
        %v983 = vld [vmem:[%s5 + $0x38] sm:$0xf]
        %v984 = vld [vmem:[%s5 + $0x3c] sm:$0xf]
        %v985 = vld [vmem:[%s6] sm:$0x1]
        %v987 = vperm.slane %v985, 0
        %v1005 = vunpack.c.l.b16 %v969
        %v1006 = vunpack.c.l.b16 %v970
        %v1007 = vunpack.c.l.b16 %v971
        %v1008 = vunpack.c.l.b16 %v972
        %v1009 = vunpack.c.l.b16 %v973
        %v1010 = vunpack.c.l.b16 %v974
        %v1011 = vunpack.c.l.b16 %v975
        %v1012 = vunpack.c.l.b16 %v976
        %v1013 = vunpack.c.l.b16 %v977
        %v1014 = vunpack.c.l.b16 %v978
        %v1015 = vunpack.c.l.b16 %v979
        %v1016 = vunpack.c.l.b16 %v980
        %v1017 = vunpack.c.l.b16 %v981
        %v1018 = vunpack.c.l.b16 %v982
        %v1019 = vunpack.c.l.b16 %v983
        %v1020 = vunpack.c.l.b16 %v984
        %v1021 = vpack.c.b16 %v1006, %v1005
        %v1022 = vpack.c.b16 %v1008, %v1007
        %v1023 = vpack.c.b16 %v1010, %v1009
        %v1024 = vpack.c.b16 %v1012, %v1011
        %v1025 = vpack.c.b16 %v1014, %v1013
        %v1026 = vpack.c.b16 %v1016, %v1015
        %v1027 = vpack.c.b16 %v1018, %v1017
        %v1028 = vpack.c.b16 %v1020, %v1019
        %1037 = vmatpush.bf16.msra.mxu0 %v1028
        %1038 = vmatpush.bf16.msra.mxu0 %v1027
        %1039 = vmatpush.bf16.msra.mxu0 %v1026
        %1040 = vmatpush.bf16.msra.mxu0 %v1025
        %1041 = vmatpush.bf16.msra.mxu0 %v1024
        %1042 = vmatpush.bf16.msra.mxu0 %v1023
        %1043 = vmatpush.bf16.msra.mxu0 %v1022
        %1044 = vmatpush.bf16.msra.mxu0 %v1021
        %1045 = vmatmul.bf16.gmra.mxu0 %v968
        %v1046 = vpop.f32.mrf.mxu0
        %v1047 = vadd.f32 %v987, %v1046
        %v1048 = vpop.f32.mrf.mxu0
        %v1049 = vadd.f32 %v987, %v1048
        %1050 = vdwg.mxu0
        %v1051 = vmax.f32 %v1047, 0.0
        %v1052 = vmax.f32 %v1049, 0.0
        %1053 = vst [vmem:[%s274] sm:$0xff] %v1051
        %1054 = vst [vmem:[%s274 + $0x8] sm:$0xff] %v1052
        %s1055 = sand.u32 %s181, 1
        %s1056 = scalar_lea.sflag [#allocation3], %s1055
        %s1057 = sand.u32 %s181, 1
        %s1058 = smul.addr %s1057, 16
        %s1059 = scalar_lea.vmem [#allocation2], %s1058
        // Predicated region
        $region49: #{_lambda_.1} parent=47 // pred_check
          %p1060 = pneg %p191
        $region50: #{_lambda_.1} parent=47 // pred_check_branch
          %1062 = sbr.rel (%p1060) target = $region52
        $region51: #{_lambda_.1} parent=47 // pred_region
          %s1063 = smul.u32 2, %s21
          %1065 = vsyncadd %s1056, 0
          %s1066 = smul.addr %s1063, 8
          %s1067 = scalar_lea.hbm %s7, %s1066
          %s1068 = sshll.u32 %s1059, 4
          %s1069 = int_to_ptr.vmem [resolvable:$true] %s1068
          %s1070 = sshll.u32 %s1067, 4
          %s1071 = int_to_ptr.hbm [resolvable:$true] %s1070
          %1076 = dma.vmem_to_hbm [thread:$0]  %s1069, 256, %s1071, %s1056, 128, 128, 8
        $region52: #{_lambda_.1} parent=47 // pred_fallthru
          _
      $region48: #{_lambda_.1} parent=5 // pred_fallthru
        _
      %p1077 = scmp.le.s32.totalorder 2, %s16
      // Predicated region
      $region53: #{_lambda_.1} parent=5 // pred_check
        %p1078 = pneg %p1077
      $region54: #{_lambda_.1} parent=5 // pred_check_branch
        %1080 = sbr.rel (%p1078) target = $region56
      $region55: #{_lambda_.1} parent=5 // pred_region
        %s1081 = ssub.s32 %s16, 2
        // Predicated region
        $region57: #{_lambda_.1} parent=55 // pred_check
          %p1082 = pneg %p197
        $region58: #{_lambda_.1} parent=55 // pred_check_branch
          %1084 = sbr.rel (%p1082) target = $region60
        $region59: #{_lambda_.1} parent=55 // pred_region
          %s1085 = sand.u32 %s182, 1
          %s1086 = scalar_lea.sflag [#allocation3], %s1085
          %s1087 = sand.u32 %s182, 1
          %s1088 = smul.addr %s1087, 16
          %s1089 = scalar_lea.vmem [#allocation2], %s1088
          %1091 = dma.done %s1086, 256
        $region60: #{_lambda_.1} parent=55 // pred_fallthru
          _
      $region56: #{_lambda_.1} parent=5 // pred_fallthru
        _
    $region6: #{_lambda_.1} parent=1 // loop_footer
      %s20 = sadd.s32 1, %s16
    $region7: #{_lambda_.1} parent=1 // loop_footer_branch
      %15 = sbr.rel target = $region3
    $region8: #{_lambda_.1} parent=1 // loop_exit
      _
    %1092 = vsyncpa [#allocation3], 1
    %s1093 = scalar_lea.sflag [#allocation3], 1
    %1094 = vsyncpa %s1093, 1

</llo_original>
